<compile_context>
chip_gen: v6e
topology: v6e:2x2x1
jax: 0.10.0
libtpu: 0.0.40
codegen_flags: <defaults>
</compile_context>

<pallas_src>
import jax
import jax.numpy as jnp
from jax.experimental import pallas as pl
from jax.experimental.pallas import tpu as pltpu


def _decoder_kernel(w_ref, b_ref, x_ref, o_ref):
    # w_ref: (C, H)      weight in native nn.Linear layout (resident across grid)
    # b_ref: (C, 1)      bias, broadcast along the lane (T) dimension
    # x_ref: (1, TT, H)  encoder tile for one batch element
    # o_ref: (1, C, TT)  transposed logits tile (lane-dense along T)
    x = x_ref[0]                      # (TT, H)
    w = w_ref[...]                    # (C, H)
    # Fused Linear + transpose(1, 2): contract on H -> (C, TT)
    y = jax.lax.dot_general(
        w, x,
        dimension_numbers=(((1,), (1,)), ((), ())),
        preferred_element_type=jnp.float32,
    )
    o_ref[0] = (y + b_ref[...]).astype(o_ref.dtype)


def decoder_forward(encoder, weight, bias, *, t_tile=512):
    """Pallas implementation of Decoder.forward.

    encoder: (B, T, H) float32
    weight:  (C, H)    float32   (PyTorch nn.Linear layout)
    bias:    (C,)      float32
    returns: (B, C, T) float32   (matches x.transpose(1, 2))
    """
    B, T, H = encoder.shape
    C = weight.shape[0]

    # Seq tile: full extent if small, else t_tile (multiple of 128, so partial
    # trailing blocks stay legal and stores stay lane-dense).
    TT = T if T <= t_tile else t_tile
    grid = (B, pl.cdiv(T, TT))

    bias2d = bias.reshape(C, 1)

    cost = pl.CostEstimate(
        flops=2 * B * T * H * C,
        transcendentals=0,
        bytes_accessed=4 * (B * T * H + C * H + B * C * T + C),
    )

    return pl.pallas_call(
        _decoder_kernel,
        out_shape=jax.ShapeDtypeStruct((B, C, T), encoder.dtype),
        grid_spec=pltpu.PrefetchScalarGridSpec(
            num_scalar_prefetch=0,
            grid=grid,
            in_specs=[
                pl.BlockSpec((C, H), lambda b, i: (0, 0)),        # weight (resident)
                pl.BlockSpec((C, 1), lambda b, i: (0, 0)),        # bias   (resident)
                pl.BlockSpec((1, TT, H), lambda b, i: (b, i, 0)), # encoder tile
            ],
            out_specs=pl.BlockSpec((1, C, TT), lambda b, i: (b, 0, i)),
        ),
        compiler_params=pltpu.CompilerParams(
            dimension_semantics=("parallel", "parallel"),
            vmem_limit_bytes=32 * 1024 * 1024,
        ),
        cost_estimate=cost,
    )(weight, bias2d, encoder)


if __name__ == "__main__":
    # Small shapes consistent with the module's forward.
    batch, seq, hidden_size, num_classes = 2, 8, 32, 16

    key = jax.random.PRNGKey(0)
    k_x, k_w, k_b = jax.random.split(key, 3)

    encoder = jax.random.normal(k_x, (batch, seq, hidden_size), dtype=jnp.float32)

    # Deterministic parameter init (uniform, like nn.Linear's default range).
    bound = 1.0 / (hidden_size ** 0.5)
    weight = jax.random.uniform(k_w, (num_classes, hidden_size),
                                minval=-bound, maxval=bound, dtype=jnp.float32)
    bias = jax.random.uniform(k_b, (num_classes,),
                              minval=-bound, maxval=bound, dtype=jnp.float32)

    logits = decoder_forward(encoder, weight, bias)
    logits = jax.block_until_ready(logits)

    # Correctness check against a pure-JAX reference.
    ref = jnp.transpose(jnp.einsum("bth,ch->btc", encoder, weight) + bias,
                        (0, 2, 1))
    assert logits.shape == (batch, num_classes, seq)
    assert jnp.allclose(logits, ref, atol=1e-5, rtol=1e-5)

    print("KERNEL_OK")
</pallas_src>

<mosaic_0001>
module attributes {stable_mosaic.version = 11 : i64} {
  func.func @_decoder_kernel(%arg0: i32, %arg1: i32, %arg2: memref<16x32xf32, #tpu.memory_space<vmem>>, %arg3: memref<16x1xf32, #tpu.memory_space<vmem>>, %arg4: memref<1x8x32xf32, #tpu.memory_space<vmem>>, %arg5: memref<1x16x8xf32, #tpu.memory_space<vmem>>) attributes {dimension_semantics = [#tpu.dimension_semantics<parallel>, #tpu.dimension_semantics<parallel>], iteration_bounds = array<i64: 2, 1>, scalar_prefetch = 0 : i64, scratch_operands = 0 : i64, tpu.core_type = #tpu.core_type<tc>, window_params = [{pipeline_mode = #tpu.pipeline_mode<synchronous>, transform_indices = @transform_0, window_bounds = array<i64: 16, 32>}, {pipeline_mode = #tpu.pipeline_mode<synchronous>, transform_indices = @transform_1, window_bounds = array<i64: 16, 1>}, {transform_indices = @transform_2, window_bounds = array<i64: 1, 8, 32>}, {transform_indices = @transform_3, window_bounds = array<i64: 1, 16, 8>}]} {
    %c0 = arith.constant 0 : index
    %c0_0 = arith.constant 0 : index
    %c0_1 = arith.constant 0 : index
    %0 = vector.load %arg4[%c0, %c0_0, %c0_1] : memref<1x8x32xf32, #tpu.memory_space<vmem>>, vector<1x8x32xf32>
    %1 = vector.shape_cast %0 : vector<1x8x32xf32> to vector<8x32xf32>
    %c0_2 = arith.constant 0 : index
    %c0_3 = arith.constant 0 : index
    %2 = vector.load %arg2[%c0_2, %c0_3] : memref<16x32xf32, #tpu.memory_space<vmem>>, vector<16x32xf32>
    %cst = arith.constant dense<0.000000e+00> : vector<16x8xf32>
    %3 = tpu.matmul %2, %1, %cst {dimension_numbers = #tpu.dot_dimension_numbers<[1], [1], [0], [0], [0, 0, 1, 0], [], []>} : vector<16x32xf32>, vector<8x32xf32>, vector<16x8xf32> -> vector<16x8xf32>
    %c0_4 = arith.constant 0 : index
    %c0_5 = arith.constant 0 : index
    %4 = vector.load %arg3[%c0_4, %c0_5] : memref<16x1xf32, #tpu.memory_space<vmem>>, vector<16x1xf32>
    %5 = vector.broadcast %4 : vector<16x1xf32> to vector<16x8xf32>
    %6 = arith.addf %3, %5 : vector<16x8xf32>
    %c0_6 = arith.constant 0 : index
    %c0_7 = arith.constant 0 : index
    %c0_8 = arith.constant 0 : index
    %7 = vector.load %arg5[%c0_6, %c0_7, %c0_8] : memref<1x16x8xf32, #tpu.memory_space<vmem>>, vector<1x16x8xf32>
    %8 = vector.shape_cast %7 : vector<1x16x8xf32> to vector<16x8xf32>
    %9 = vector.shape_cast %6 : vector<16x8xf32> to vector<1x16x8xf32>
    tpu.vector_store %arg5[%c0_6, %c0_7, %c0_8], %9 {strides = array<i32>} : memref<1x16x8xf32, #tpu.memory_space<vmem>>, vector<1x16x8xf32>,
    return
  }
  func.func @transform_0(%arg0: i32, %arg1: i32) -> (i32, i32) {
    %c0_i32 = arith.constant 0 : i32
    %c0_i32_0 = arith.constant 0 : i32
    %c0_i32_1 = arith.constant 0 : i32
    return %c0_i32, %c0_i32_0 : i32, i32
  }
  func.func @transform_1(%arg0: i32, %arg1: i32) -> (i32, i32) {
    %c0_i32 = arith.constant 0 : i32
    %c0_i32_0 = arith.constant 0 : i32
    %c0_i32_1 = arith.constant 0 : i32
    return %c0_i32, %c0_i32_0 : i32, i32
  }
  func.func @transform_2(%arg0: i32, %arg1: i32) -> (i32, i32, i32) {
    %c0_i32 = arith.constant 0 : i32
    %c0_i32_0 = arith.constant 0 : i32
    return %arg0, %arg1, %c0_i32 : i32, i32, i32
  }
  func.func @transform_3(%arg0: i32, %arg1: i32) -> (i32, i32, i32) {
    %c0_i32 = arith.constant 0 : i32
    %c0_i32_0 = arith.constant 0 : i32
    return %arg0, %c0_i32, %arg1 : i32, i32, i32
  }
}

</mosaic_0001>

<llo_original>
// kernel: tpu_custom_call.1
$region0: #{tpu_custom_call.1}
  #allocation0 [shape = 'u32[]', space=smem, size = 0x4, offset = 0x4, fixed_abs, tag = 'smem constant byte address 0x4 - core index']
  #allocation1 [shape = 'u32[144,128]{1,0:T(1,128)}', space=vmem, size = 0x12000, scoped, tag = 'internal scratch']
  %s0 = inlined_call_operand.vmem [shape: f32[16,32], index: 0, kind: input, shape index: {}]
  %s1 = inlined_call_operand.vmem [shape: f32[16,1], index: 1, kind: input, shape index: {}]
  %s2 = inlined_call_operand.hbm [shape: f32[2,8,32], index: 2, kind: input, shape index: {}]
  %s3 = inlined_call_operand.vmem [shape: f32[2,16,8], index: 3, kind: output, shape index: {}]
  %s4 = sld [smem:[#allocation0]]
  $region49: #{tpu_custom_call.1} parent=0
    _
  %s6 = ssub.s32 1, %s4
  %s7 = scalar_select 0, %s6, %s4
  $region1: #{tpu_custom_call.1} parent=0
    #allocation2 [shape = 'u8[8192]{0}', space=vmem, size = 0x2000, scoped, tag = 'input window, operand 2']
    #allocation3 [shape = 's32[2]{0}', space=sflag, size = 0x8, scoped, tag = 'scoped memory for tpu_custom_call.1']
    %8 = vsyncpa [#allocation3], 0
    %s9 = scalar_lea.sflag [#allocation3], 1
    %10 = vsyncpa %s9, 0
    loop: start=0, step=1, limit=4
    $region2: #{tpu_custom_call.1} parent=1 // loop_pre_header
      _
    $region3: #{tpu_custom_call.1} parent=1 // loop_header
      %s12 = sphi 0, %s16
      %p13 = scmp.ge.s32.totalorder %s12, 4
      %s19 = sphi 0, %s31
      %s20 = sphi 0, %s27
      %s21 = sphi 0, %s19
      %s22 = sphi 0, %s20
      %s23 = sphi 0, %s21
      %s24 = sphi 0, %s22
      %s32 = sphi 0, %s32
      %s34 = sphi 0, %s32
      %s35 = sphi 0, %s34
      %s49 = sphi 0, %s35
      %s53 = sphi 0, %s53
      %s55 = sphi 0, %s53
      %s56 = sphi 0, %s55
      %s70 = sphi 0, %s56
      %s78 = sphi 0, %s80
      %s81 = sphi 0, %s78
      %s82 = sphi 0, %s81
      %s98 = sphi 0, %s82
      %s106 = sphi 0, %s108
      %s109 = sphi 0, %s106
      %s110 = sphi 0, %s109
      %s126 = sphi 0, %s110
    $region4: #{tpu_custom_call.1} parent=1 // loop_header_branch
      %15 = sbr.rel (%p13) target = $region8
    $region5: #{tpu_custom_call.1} parent=1 // loop_body
      %s17 = ssub.s32 %s12, 1
      %s18 = ssub.s32 %s12, 2
      %s25 = sadd.s32 1, %s20
      %p26 = scmp.ge.s32.totalorder %s25, 1
      %s27 = scalar_select %p26, 0, %s25
      %s28 = sadd.s32 1, %s19
      %s29 = scalar_select %p26, %s28, %s19
      %p30 = scmp.ge.s32.totalorder %s29, 2
      %s31 = scalar_select %p30, 0, %s29
      %s33 = sadd.s32 %s32, 1
      %p36 = scmp.eq.s32.totalorder %s12, 1
      %p37 = scmp.ne.s32.totalorder %s32, %s34
      %p38 = scmp.eq.s32.totalorder %s12, 0
      %p39 = por %p37, %p38
      %p40 = scmp.ne.s32.totalorder %s32, %s34
      %p41 = scmp.eq.s32.totalorder %s17, 1
      %p42 = por %p40, %p41
      %p43 = scmp.ne.s32.totalorder %s34, %s35
      %p44 = scmp.eq.s32.totalorder %s17, 0
      %p45 = por %p43, %p44
      %p46 = scmp.ne.s32.totalorder %s34, %s35
      %p47 = scmp.eq.s32.totalorder %s18, 1
      %p48 = por %p46, %p47
      %p50 = scmp.ne.s32.totalorder %s35, %s49
      %p51 = scmp.eq.s32.totalorder %s18, 0
      %p52 = por %p50, %p51
      %s54 = sadd.s32 %s53, 1
      %p57 = scmp.eq.s32.totalorder %s12, 1
      %p58 = scmp.ne.s32.totalorder %s53, %s55
      %p59 = scmp.eq.s32.totalorder %s12, 0
      %p60 = por %p58, %p59
      %p61 = scmp.ne.s32.totalorder %s53, %s55
      %p62 = scmp.eq.s32.totalorder %s17, 1
      %p63 = por %p61, %p62
      %p64 = scmp.ne.s32.totalorder %s55, %s56
      %p65 = scmp.eq.s32.totalorder %s17, 0
      %p66 = por %p64, %p65
      %p67 = scmp.ne.s32.totalorder %s55, %s56
      %p68 = scmp.eq.s32.totalorder %s18, 1
      %p69 = por %p67, %p68
      %p71 = scmp.ne.s32.totalorder %s56, %s70
      %p72 = scmp.eq.s32.totalorder %s18, 0
      %p73 = por %p71, %p72
      %s74 = ssub.s32 %s19, %s31
      %s75 = ssub.s32 %s20, %s27
      %s76 = sor.u32 %s74, %s75
      %p77 = scmp.eq.s32.totalorder %s76, 0
      %s79 = sadd.s32 %s78, 1
      %s80 = scalar_select %p77, %s78, %s79
      %p83 = pneg %p77
      %p84 = scmp.eq.s32.totalorder %s12, 1
      %p85 = por %p83, %p84
      %p86 = scmp.ne.s32.totalorder %s78, %s81
      %p87 = scmp.eq.s32.totalorder %s12, 0
      %p88 = por %p86, %p87
      %p89 = scmp.ne.s32.totalorder %s78, %s81
      %p90 = scmp.eq.s32.totalorder %s17, 1
      %p91 = por %p89, %p90
      %p92 = scmp.ne.s32.totalorder %s81, %s82
      %p93 = scmp.eq.s32.totalorder %s17, 0
      %p94 = por %p92, %p93
      %p95 = scmp.ne.s32.totalorder %s81, %s82
      %p96 = scmp.eq.s32.totalorder %s18, 1
      %p97 = por %p95, %p96
      %p99 = scmp.ne.s32.totalorder %s82, %s98
      %p100 = scmp.eq.s32.totalorder %s18, 0
      %p101 = por %p99, %p100
      %s102 = ssub.s32 %s19, %s31
      %s103 = ssub.s32 %s20, %s27
      %s104 = sor.u32 %s102, %s103
      %p105 = scmp.eq.s32.totalorder %s104, 0
      %s107 = sadd.s32 %s106, 1
      %s108 = scalar_select %p105, %s106, %s107
      %p111 = pneg %p105
      %p112 = scmp.eq.s32.totalorder %s12, 1
      %p113 = por %p111, %p112
      %p114 = scmp.ne.s32.totalorder %s106, %s109
      %p115 = scmp.eq.s32.totalorder %s12, 0
      %p116 = por %p114, %p115
      %p117 = scmp.ne.s32.totalorder %s106, %s109
      %p118 = scmp.eq.s32.totalorder %s17, 1
      %p119 = por %p117, %p118
      %p120 = scmp.ne.s32.totalorder %s109, %s110
      %p121 = scmp.eq.s32.totalorder %s17, 0
      %p122 = por %p120, %p121
      %p123 = scmp.ne.s32.totalorder %s109, %s110
      %p124 = scmp.eq.s32.totalorder %s18, 1
      %p125 = por %p123, %p124
      %p127 = scmp.ne.s32.totalorder %s110, %s126
      %p128 = scmp.eq.s32.totalorder %s18, 0
      %p129 = por %p127, %p128
      %p130 = scmp.le.s32.totalorder 1, %s12
      %p131 = scmp.lt.s32.totalorder %s12, 3
      %p132 = pnand %p130, %p131
      %p133 = pneg %p132
      // Predicated region
      $region9: #{tpu_custom_call.1} parent=5 // pred_check
        _
      $region10: #{tpu_custom_call.1} parent=5 // pred_check_branch
        %135 = sbr.rel (%p132) target = $region12
      $region11: #{tpu_custom_call.1} parent=5 // pred_region
        %s136 = ssub.s32 %s12, 1
        // Predicated region
        $region13: #{tpu_custom_call.1} parent=11 // pred_check
          %p137 = pneg %p45
        $region14: #{tpu_custom_call.1} parent=11 // pred_check_branch
          %139 = sbr.rel (%p137) target = $region16
        $region15: #{tpu_custom_call.1} parent=11 // pred_region
          _
        $region16: #{tpu_custom_call.1} parent=11 // pred_fallthru
          _
        // Predicated region
        $region17: #{tpu_custom_call.1} parent=11 // pred_check
          %p140 = pneg %p66
        $region18: #{tpu_custom_call.1} parent=11 // pred_check_branch
          %142 = sbr.rel (%p140) target = $region20
        $region19: #{tpu_custom_call.1} parent=11 // pred_region
          _
        $region20: #{tpu_custom_call.1} parent=11 // pred_fallthru
          _
      $region12: #{tpu_custom_call.1} parent=5 // pred_fallthru
        _
      %p143 = scmp.lt.s32.totalorder %s12, 2
      // Predicated region
      $region21: #{tpu_custom_call.1} parent=5 // pred_check
        %p144 = pneg %p143
      $region22: #{tpu_custom_call.1} parent=5 // pred_check_branch
        %146 = sbr.rel (%p144) target = $region24
      $region23: #{tpu_custom_call.1} parent=5 // pred_region
        // Predicated region
        $region25: #{tpu_custom_call.1} parent=23 // pred_check
          %p147 = pneg %p88
        $region26: #{tpu_custom_call.1} parent=23 // pred_check_branch
          %149 = sbr.rel (%p147) target = $region28
        $region27: #{tpu_custom_call.1} parent=23 // pred_region
          %s150 = sand.u32 %s78, 1
          %s151 = scalar_lea.sflag [#allocation3], %s150
          %s152 = sand.u32 %s78, 1
          %s153 = smul.addr %s152, 8
          %s154 = scalar_lea.vmem [#allocation2], %s153
          %s156 = ssub.s32 128, 128
          %157 = vsyncadd %s151, %s156
          %s158 = sadd.s32 %s20, %s19
          %s159 = smul.addr %s158, 128
          %s160 = scalar_lea.hbm %s2, %s159
          %s162 = sshll.u32 %s154, 4
          %s163 = int_to_ptr.vmem [resolvable:$true] %s162
          %165 = dma.hbm_to_vmem [thread:$0]  %s160, 128, %s163, %s151
        $region28: #{tpu_custom_call.1} parent=23 // pred_fallthru
          _
      $region24: #{tpu_custom_call.1} parent=5 // pred_fallthru
        _
      %p166 = scmp.le.s32.totalorder 1, %s12
      %p167 = scmp.lt.s32.totalorder %s12, 3
      %p168 = pnand %p166, %p167
      %p169 = pneg %p168
      // Predicated region
      $region29: #{tpu_custom_call.1} parent=5 // pred_check
        _
      $region30: #{tpu_custom_call.1} parent=5 // pred_check_branch
        %171 = sbr.rel (%p168) target = $region32
      $region31: #{tpu_custom_call.1} parent=5 // pred_region
        %s172 = ssub.s32 %s12, 1
        %s173 = sand.u32 %s81, 1
        %s174 = scalar_lea.sflag [#allocation3], %s173
        %s175 = sand.u32 %s81, 1
        %s176 = smul.addr %s175, 8
        %s177 = scalar_lea.vmem [#allocation2], %s176
        // Predicated region
        $region33: #{tpu_custom_call.1} parent=31 // pred_check
          %p178 = pneg %p94
        $region34: #{tpu_custom_call.1} parent=31 // pred_check_branch
          %180 = sbr.rel (%p178) target = $region36
        $region35: #{tpu_custom_call.1} parent=31 // pred_region
          %181 = dma.done %s174, 128
        $region36: #{tpu_custom_call.1} parent=31 // pred_fallthru
          _
        %p182 = pneg %p45
        %p183 = pneg %p42
        %p184 = pneg %p66
        %p185 = pneg %p63
        %s186 = sand.u32 %s81, 1
        %s187 = scalar_lea.sflag [#allocation3], %s186
        %s188 = sand.u32 %s81, 1
        %s189 = smul.addr %s188, 8
        %s190 = scalar_lea.vmem [#allocation2], %s189
        %p191 = pneg %p94
        %p192 = pneg %p91
        %p193 = pneg %p122
        %p194 = pneg %p119
        %p195 = scmp.lt.s32.totalorder %s21, 1
        %s196 = scalar_select %p195, %s21, 1
        %p197 = scmp.lt.s32.totalorder %s22, 0
        %s198 = scalar_select %p197, %s22, 0
        %s199 = smul.addr %s196, 2
        %s200 = sadd.s32 %s198, %s199
        %s201 = smul.addr %s200, 8
        %s202 = scalar_lea.vmem %s3, %s201
        %p203 = scmp.lt.s32.totalorder %s21, 1
        %s204 = scalar_select %p203, %s21, 1
        %p205 = scmp.lt.s32.totalorder %s22, 0
        %s206 = scalar_select %p205, %s22, 0
        %s207 = smul.addr %s204, 2
        %s208 = sadd.s32 %s206, %s207
        %s209 = smul.addr %s208, 8
        %s210 = scalar_lea.vmem %s3, %s209
        %v211 = vld [vmem:[%s177] sm:$0xff]
        %v212 = vld [vmem:[%s0] sm:$0xff]
        %v213 = vld [vmem:[%s0 + $0x8] sm:$0xff]
        %v214 = vld [vmem:[%s1] sm:$0xff]
        %v215 = vld [vmem:[%s1 + $0x8] sm:$0xff]
        %217 = vset.pattern.permute.xlu0 0
        %218 = vperm.xlu0 %217, %v214
        %v219 = vpop.permute.xlu0 %218
        %222 = vset.pattern.permute.xlu0 0
        %223 = vperm.xlu0 %222, %v215
        %v224 = vpop.permute.xlu0 %223
        %vm226 = vcmask 261120
        %v228 = vsel %vm226, %v212, 0
        %v231 = vsel %vm226, %v213, 0
        %v234 = vsel %vm226, %v211, 0
        %236 = vmatprep.subr.mxu0 0.0
        %237 = vmatpush1.xpose.msra.mxu0 0.0
        %238 = vmatprep.subr.mxu0 0.0
        %239 = vmatpush1.xpose.msra.mxu0 0.0
        %240 = vmatprep.subr.mxu0 0.0
        %241 = vmatpush1.xpose.msra.mxu0 0.0
        %242 = vmatprep.subr.mxu0 0.0
        %243 = vmatpush1.xpose.msra.mxu0 0.0
        %244 = vmatprep.subr.mxu0 0.0
        %245 = vmatpush1.xpose.msra.mxu0 0.0
        %246 = vmatprep.subr.mxu0 0.0
        %247 = vmatpush1.xpose.msra.mxu0 0.0
        %248 = vmatprep.subr.mxu0 0.0
        %249 = vmatpush1.xpose.msra.mxu0 0.0
        %250 = vmatprep.subr.mxu0 0.0
        %251 = vmatpush1.xpose.msra.mxu0 0.0
        %252 = vmatprep.subr.mxu0 0.0
        %253 = vmatpush1.xpose.msra.mxu0 0.0
        %254 = vmatprep.subr.mxu0 0.0
        %255 = vmatpush1.xpose.msra.mxu0 0.0
        %256 = vmatprep.subr.mxu0 0.0
        %257 = vmatpush1.xpose.msra.mxu0 0.0
        %258 = vmatprep.subr.mxu0 0.0
        %259 = vmatpush1.xpose.msra.mxu0 0.0
        %260 = vmatprep.subr.mxu0 0.0
        %261 = vmatpush1.xpose.msra.mxu0 0.0
        %262 = vmatprep.subr.mxu0 0.0
        %263 = vmatpush1.xpose.msra.mxu0 0.0
        %264 = vmatprep.subr.mxu0 0.0
        %265 = vmatpush1.xpose.msra.mxu0 0.0
        %266 = vmatprep.subr.mxu0 0.0
        %267 = vmatpush1.xpose.msra.mxu0 %v234
        %268 = vmatprep.subr.mxu0 0.0
        %269 = vmatpush2.xpose.msra.mxu0 0.0
        %270 = vmatprep.subr.mxu0 0.0
        %271 = vmatpush2.xpose.msra.mxu0 0.0
        %272 = vmatprep.subr.mxu0 0.0
        %273 = vmatpush2.xpose.msra.mxu0 0.0
        %274 = vmatprep.subr.mxu0 0.0
        %275 = vmatpush2.xpose.msra.mxu0 0.0
        %276 = vmatprep.subr.mxu0 0.0
        %277 = vmatpush2.xpose.msra.mxu0 0.0
        %278 = vmatprep.subr.mxu0 0.0
        %279 = vmatpush2.xpose.msra.mxu0 0.0
        %280 = vmatprep.subr.mxu0 0.0
        %281 = vmatpush2.xpose.msra.mxu0 0.0
        %282 = vmatprep.subr.mxu0 0.0
        %283 = vmatpush2.xpose.msra.mxu0 0.0
        %284 = vmatprep.subr.mxu0 0.0
        %285 = vmatpush2.xpose.msra.mxu0 0.0
        %286 = vmatprep.subr.mxu0 0.0
        %287 = vmatpush2.xpose.msra.mxu0 0.0
        %288 = vmatprep.subr.mxu0 0.0
        %289 = vmatpush2.xpose.msra.mxu0 0.0
        %290 = vmatprep.subr.mxu0 0.0
        %291 = vmatpush2.xpose.msra.mxu0 0.0
        %292 = vmatprep.subr.mxu0 0.0
        %293 = vmatpush2.xpose.msra.mxu0 0.0
        %294 = vmatprep.subr.mxu0 0.0
        %295 = vmatpush2.xpose.msra.mxu0 0.0
        %296 = vmatprep.subr.mxu0 0.0
        %297 = vmatpush2.xpose.msra.mxu0 0.0
        %298 = vmatprep.subr.mxu0 0.0
        %299 = vmatpush2.xpose.msra.mxu0 0.0
        %300 = vmatprep.mubr.f32.mxu0 0.0
        %301 = vmatmul.mubr.f32.gmra.mxu0 %v228
        %v302 = vpop.f32.mrf.mxu0
        %v303 = vadd.f32 %v219, %v302
        %v304 = vpop.f32.mrf.mxu0
        %305 = vmatprep.mubr.f32.mxu0 0.0
        %306 = vmatmul.mubr.f32.gmra.mxu0 %v231
        %v307 = vpop.f32.mrf.mxu0
        %v308 = vadd.f32 %v224, %v307
        %v309 = vpop.f32.mrf.mxu0
        %310 = vdwg.mxu0
        %vm311 = vcmask 64512
        %312 = vst.msk [vmem:[%s210] sm:$0xff] %vm311, %v303
        %313 = vst.msk [vmem:[%s210 + $0x8] sm:$0xff] %vm311, %v308
        %p314 = scmp.lt.s32.totalorder %s21, 1
        %s315 = scalar_select %p314, %s21, 1
        %p316 = scmp.lt.s32.totalorder %s22, 0
        %s317 = scalar_select %p316, %s22, 0
        %s318 = smul.addr %s315, 2
        %s319 = sadd.s32 %s317, %s318
        %s320 = smul.addr %s319, 8
        %s321 = scalar_lea.vmem %s3, %s320
        // Predicated region
        $region37: #{tpu_custom_call.1} parent=31 // pred_check
          %p322 = pneg %p119
        $region38: #{tpu_custom_call.1} parent=31 // pred_check_branch
          %324 = sbr.rel (%p322) target = $region40
        $region39: #{tpu_custom_call.1} parent=31 // pred_region
          _
        $region40: #{tpu_custom_call.1} parent=31 // pred_fallthru
          _
      $region32: #{tpu_custom_call.1} parent=5 // pred_fallthru
        _
      %p325 = scmp.le.s32.totalorder 2, %s12
      // Predicated region
      $region41: #{tpu_custom_call.1} parent=5 // pred_check
        %p326 = pneg %p325
      $region42: #{tpu_custom_call.1} parent=5 // pred_check_branch
        %328 = sbr.rel (%p326) target = $region44
      $region43: #{tpu_custom_call.1} parent=5 // pred_region
        %s329 = ssub.s32 %s12, 2
        // Predicated region
        $region45: #{tpu_custom_call.1} parent=43 // pred_check
          %p330 = pneg %p125
        $region46: #{tpu_custom_call.1} parent=43 // pred_check_branch
          %332 = sbr.rel (%p330) target = $region48
        $region47: #{tpu_custom_call.1} parent=43 // pred_region
          %p333 = scmp.lt.s32.totalorder %s23, 1
          %s334 = scalar_select %p333, %s23, 1
          %p335 = scmp.lt.s32.totalorder %s24, 0
          %s336 = scalar_select %p335, %s24, 0
          %s337 = smul.addr %s334, 2
          %s338 = sadd.s32 %s336, %s337
          %s339 = smul.addr %s338, 8
          %s340 = scalar_lea.vmem %s3, %s339
        $region48: #{tpu_custom_call.1} parent=43 // pred_fallthru
          _
      $region44: #{tpu_custom_call.1} parent=5 // pred_fallthru
        _
    $region6: #{tpu_custom_call.1} parent=1 // loop_footer
      %s16 = sadd.s32 1, %s12
    $region7: #{tpu_custom_call.1} parent=1 // loop_footer_branch
      %11 = sbr.rel target = $region3
    $region8: #{tpu_custom_call.1} parent=1 // loop_exit
      _
    %341 = vsyncpa [#allocation3], 1
    %s342 = scalar_lea.sflag [#allocation3], 1
    %343 = vsyncpa %s342, 1

</llo_original>
